<compile_context>
chip_gen: v7x
topology: tpu7x:2x2x1
jax: 0.10.0
libtpu: 0.0.40
codegen_flags: <defaults>
</compile_context>

<pallas_src>
import functools

import jax
import jax.numpy as jnp
from jax.experimental import pallas as pl
from jax.experimental.pallas import tpu as pltpu


_LANES = 512             # lane-dense last dim (multiple of 128)
_MAX_TILE_ROWS = 1024    # per-input tile <= 1024*512*4 B = 2 MiB in f32
_MIN_PALLAS_ELEMS = 1 << 20   # below this, plain JAX wins (launch overhead)


def _round_up(x, m):
    return ((x + m - 1) // m) * m


def _mse_partial_kernel(pred_ref, tgt_ref, mask_ref, loss_ref, msum_ref,
                        *, tile_rows, valid_rows, out_rows):
    """Per-block partial sums of mask*(pred-target)^2 and mask.

    Loads native dtypes, casts to f32 on the VPU, folds the tile down to a
    lane-dense (out_rows, _LANES) partial block.  The final cross-lane/row
    reduction + divide is cheap scalar glue done once in the JAX wrapper.
    """
    pred = pred_ref[...].astype(jnp.float32)
    tgt = tgt_ref[...].astype(jnp.float32)
    m = mask_ref[...].astype(jnp.float32)

    res = pred - tgt
    loss = m * res * res

    if valid_rows % tile_rows != 0:
        # The last grid block hangs past the end of the array: rows beyond
        # valid_rows contain undefined data.  Mask them with jnp.where (not a
        # multiply) so garbage NaN/Inf cannot propagate into the sums.
        base = pl.program_id(0) * tile_rows
        row_id = base + jax.lax.broadcasted_iota(
            jnp.int32, (tile_rows, _LANES), 0)
        valid = row_id < valid_rows
        loss = jnp.where(valid, loss, 0.0)
        m = jnp.where(valid, m, 0.0)

    if out_rows == 8:
        # Sublane-aligned fold: (T, L) -> (T//8, 8, L) -> sum over axis 0.
        # Pure VPU vreg adds and unmasked (8, 512) stores.
        loss_ref[...] = loss.reshape(tile_rows // 8, 8, _LANES).sum(axis=0)
        msum_ref[...] = m.reshape(tile_rows // 8, 8, _LANES).sum(axis=0)
    else:
        # Tiny single-block path: the (1, 512) output equals the full array.
        loss_ref[...] = jnp.sum(loss, axis=0, keepdims=True)
        msum_ref[...] = jnp.sum(m, axis=0, keepdims=True)


def _mse_loss_ref(prediction, target, mask):
    """Plain-JAX reference / small-input fast path (batch-based reduction)."""
    m = mask.astype(jnp.float32)
    res = prediction.astype(jnp.float32) - target.astype(jnp.float32)
    image_loss = jnp.sum(m * res * res, axis=(1, 2))
    M = jnp.sum(m, axis=(1, 2))
    divisor = jnp.sum(2.0 * M)
    return jnp.where(divisor == 0.0, jnp.float32(0.0),
                     jnp.sum(image_loss) / divisor)


def _masked_mse_loss_pallas(prediction, target, mask):
    n = int(prediction.size)

    # Native dtypes all the way into the kernel (bf16 pred/target halve HBM
    # traffic); a bool mask travels as int8 (1 B/elem) instead of f32.
    if mask.dtype == jnp.bool_:
        mask = mask.astype(jnp.int8)

    pred_f = prediction.reshape(-1)   # metadata-only for contiguous inputs
    tgt_f = target.reshape(-1)
    mask_f = mask.reshape(-1)

    rows = pl.cdiv(n, _LANES)
    if n % _LANES != 0:
        # TODO(synk): the ragged tail (< 512 elems) still pads the flat arrays,
        # which materializes a copy; could be folded into an in-kernel lane
        # mask like the row mask below.
        pad = rows * _LANES - n
        pred_f = jnp.pad(pred_f, (0, pad))
        tgt_f = jnp.pad(tgt_f, (0, pad))
        mask_f = jnp.pad(mask_f, (0, pad))   # zero mask -> padding is inert

    pred2d = pred_f.reshape(rows, _LANES)
    tgt2d = tgt_f.reshape(rows, _LANES)
    mask2d = mask_f.reshape(rows, _LANES)

    if rows <= 16:
        # Tiny input: a single full-extent block.
        tile_rows = rows
    else:
        # Aim for >= 4 grid blocks (keeps both v7x TensorCores busy on the
        # "parallel" axis) but never exceed 1024x512 f32 (2 MiB) per input
        # tile -> <= 12 MiB in flight with double buffering.
        tile_rows = min(_MAX_TILE_ROWS,
                        max(8, _round_up(pl.cdiv(rows, 4), 8)))
    num_blocks = pl.cdiv(rows, tile_rows)
    out_rows = 8 if tile_rows % 8 == 0 else 1   # out_rows==1 only if 1 block

    kernel = functools.partial(_mse_partial_kernel, tile_rows=tile_rows,
                               valid_rows=rows, out_rows=out_rows)

    in_spec = pl.BlockSpec((tile_rows, _LANES), lambda i: (i, 0))
    out_spec = pl.BlockSpec((out_rows, _LANES), lambda i: (i, 0))

    bytes_in = n * (jnp.dtype(prediction.dtype).itemsize
                    + jnp.dtype(target.dtype).itemsize
                    + jnp.dtype(mask.dtype).itemsize)
    bytes_out = 2 * num_blocks * out_rows * _LANES * 4

    loss_part, mask_part = pl.pallas_call(
        kernel,
        out_shape=(
            jax.ShapeDtypeStruct((num_blocks * out_rows, _LANES), jnp.float32),
            jax.ShapeDtypeStruct((num_blocks * out_rows, _LANES), jnp.float32),
        ),
        grid_spec=pltpu.PrefetchScalarGridSpec(
            num_scalar_prefetch=0,
            grid=(num_blocks,),
            in_specs=[in_spec, in_spec, in_spec],
            out_specs=(out_spec, out_spec),
        ),
        compiler_params=pltpu.CompilerParams(
            dimension_semantics=("parallel",),
            vmem_limit_bytes=32 * 1024 * 1024),
        cost_estimate=pl.CostEstimate(
            flops=4 * n, transcendentals=0,
            bytes_accessed=bytes_in + bytes_out),
    )(pred2d, tgt2d, mask2d)

    loss_sum = jnp.sum(loss_part)        # == sum(image_loss)
    mask_sum = jnp.sum(mask_part)        # == sum(M)
    divisor = 2.0 * mask_sum             # == sum(2 * M)
    # PyTorch returns 0 when the divisor is zero.
    return jnp.where(divisor == 0.0, jnp.float32(0.0), loss_sum / divisor)


def masked_mse_loss(prediction, target, mask, *,
                    min_pallas_elems=_MIN_PALLAS_ELEMS):
    """Batch-based masked MSE loss (matches MSELoss(reduction='batch-based'))."""
    assert prediction.shape == target.shape == mask.shape
    if int(prediction.size) < min_pallas_elems:
        # pallas_call launch + partial-sum plumbing is not worth it for tiny
        # tensors; XLA's fused reduction is faster.
        return _mse_loss_ref(prediction, target, mask)
    return _masked_mse_loss_pallas(prediction, target, mask)


if __name__ == "__main__":
    key = jax.random.PRNGKey(0)
    k1, k2, k3 = jax.random.split(key, 3)

    # Primary test: B=2, H=W=16 (n=512, lane-exact -> zero-copy path, single
    # full-extent block).  Force the Pallas path so the kernel is exercised.
    B, H, W = 2, 16, 16
    prediction = jax.random.normal(k1, (B, H, W), dtype=jnp.float32)
    target = jax.random.normal(k2, (B, H, W), dtype=jnp.float32)
    mask = (jax.random.uniform(k3, (B, H, W)) > 0.3).astype(jnp.float32)

    loss = masked_mse_loss(prediction, target, mask, min_pallas_elems=0)
    loss = jax.block_until_ready(loss)
    ref = _mse_loss_ref(prediction, target, mask)
    assert jnp.allclose(loss, ref, rtol=1e-4, atol=1e-6), (loss, ref)

    # Multi-block path: rows=40, tile_rows=16, 3 blocks, partial last block ->
    # exercises the (8, 512) partial outputs and the in-kernel row mask.
    p2 = jax.random.normal(k1, (1, 40, 512), dtype=jnp.float32)
    t2 = jax.random.normal(k2, (1, 40, 512), dtype=jnp.float32)
    m2 = (jax.random.uniform(k3, (1, 40, 512)) > 0.3).astype(jnp.float32)
    l2 = jax.block_until_ready(masked_mse_loss(p2, t2, m2, min_pallas_elems=0))
    r2 = _mse_loss_ref(p2, t2, m2)
    assert jnp.allclose(l2, r2, rtol=1e-4, atol=1e-6), (l2, r2)

    # Ragged element count (n=3000, not a multiple of 512) -> tail-pad fallback.
    p3 = jax.random.normal(k1, (2, 50, 30), dtype=jnp.float32)
    t3 = jax.random.normal(k2, (2, 50, 30), dtype=jnp.float32)
    m3 = (jax.random.uniform(k3, (2, 50, 30)) > 0.3).astype(jnp.float32)
    l3 = jax.block_until_ready(masked_mse_loss(p3, t3, m3, min_pallas_elems=0))
    r3 = _mse_loss_ref(p3, t3, m3)
    assert jnp.allclose(l3, r3, rtol=1e-4, atol=1e-6), (l3, r3)

    print("KERNEL_OK")
</pallas_src>

<mosaic_0001>
module attributes {stable_mosaic.version = 11 : i64} {
  func.func @_mse_partial_kernel(%arg0: i32, %arg1: memref<1x512xf32, #tpu.memory_space<vmem>>, %arg2: memref<1x512xf32, #tpu.memory_space<vmem>>, %arg3: memref<1x512xf32, #tpu.memory_space<vmem>>, %arg4: memref<1x512xf32, #tpu.memory_space<vmem>>, %arg5: memref<1x512xf32, #tpu.memory_space<vmem>>) attributes {dimension_semantics = [#tpu.dimension_semantics<parallel>], iteration_bounds = array<i64: 1>, scalar_prefetch = 0 : i64, scratch_operands = 0 : i64, tpu.core_type = #tpu.core_type<tc>, window_params = [{transform_indices = @transform_0, window_bounds = array<i64: 1, 512>}, {transform_indices = @transform_1, window_bounds = array<i64: 1, 512>}, {transform_indices = @transform_2, window_bounds = array<i64: 1, 512>}, {transform_indices = @transform_3, window_bounds = array<i64: 1, 512>}, {transform_indices = @transform_4, window_bounds = array<i64: 1, 512>}]} {
    %c0 = arith.constant 0 : index
    %c0_0 = arith.constant 0 : index
    %0 = vector.load %arg1[%c0, %c0_0] : memref<1x512xf32, #tpu.memory_space<vmem>>, vector<1x512xf32>
    %c0_1 = arith.constant 0 : index
    %c0_2 = arith.constant 0 : index
    %1 = vector.load %arg2[%c0_1, %c0_2] : memref<1x512xf32, #tpu.memory_space<vmem>>, vector<1x512xf32>
    %c0_3 = arith.constant 0 : index
    %c0_4 = arith.constant 0 : index
    %2 = vector.load %arg3[%c0_3, %c0_4] : memref<1x512xf32, #tpu.memory_space<vmem>>, vector<1x512xf32>
    %3 = arith.subf %0, %1 : vector<1x512xf32>
    %4 = arith.mulf %2, %3 : vector<1x512xf32>
    %5 = arith.mulf %4, %3 : vector<1x512xf32>
    %cst = arith.constant dense<0.000000e+00> : vector<512xf32>
    %6 = vector.multi_reduction <add>, %5, %cst [0] : vector<1x512xf32> to vector<512xf32>
    %7 = vector.shape_cast %6 : vector<512xf32> to vector<1x512xf32>
    %c0_5 = arith.constant 0 : index
    %c0_6 = arith.constant 0 : index
    %8 = vector.load %arg4[%c0_5, %c0_6] : memref<1x512xf32, #tpu.memory_space<vmem>>, vector<1x512xf32>
    tpu.vector_store %arg4[%c0_5, %c0_6], %7 {strides = array<i32>} : memref<1x512xf32, #tpu.memory_space<vmem>>, vector<1x512xf32>,
    %cst_7 = arith.constant dense<0.000000e+00> : vector<512xf32>
    %9 = vector.multi_reduction <add>, %2, %cst_7 [0] : vector<1x512xf32> to vector<512xf32>
    %10 = vector.shape_cast %9 : vector<512xf32> to vector<1x512xf32>
    %c0_8 = arith.constant 0 : index
    %c0_9 = arith.constant 0 : index
    %11 = vector.load %arg5[%c0_8, %c0_9] : memref<1x512xf32, #tpu.memory_space<vmem>>, vector<1x512xf32>
    tpu.vector_store %arg5[%c0_8, %c0_9], %10 {strides = array<i32>} : memref<1x512xf32, #tpu.memory_space<vmem>>, vector<1x512xf32>,
    return
  }
  func.func @transform_0(%arg0: i32) -> (i32, i32) {
    %c0_i32 = arith.constant 0 : i32
    %c0_i32_0 = arith.constant 0 : i32
    return %arg0, %c0_i32 : i32, i32
  }
  func.func @transform_1(%arg0: i32) -> (i32, i32) {
    %c0_i32 = arith.constant 0 : i32
    %c0_i32_0 = arith.constant 0 : i32
    return %arg0, %c0_i32 : i32, i32
  }
  func.func @transform_2(%arg0: i32) -> (i32, i32) {
    %c0_i32 = arith.constant 0 : i32
    %c0_i32_0 = arith.constant 0 : i32
    return %arg0, %c0_i32 : i32, i32
  }
  func.func @transform_3(%arg0: i32) -> (i32, i32) {
    %c0_i32 = arith.constant 0 : i32
    %c0_i32_0 = arith.constant 0 : i32
    return %arg0, %c0_i32 : i32, i32
  }
  func.func @transform_4(%arg0: i32) -> (i32, i32) {
    %c0_i32 = arith.constant 0 : i32
    %c0_i32_0 = arith.constant 0 : i32
    return %arg0, %c0_i32 : i32, i32
  }
}

</mosaic_0001>

<llo_original>
// kernel: tpu_custom_call.1
$region0: #{tpu_custom_call.1}
  #allocation0 [shape = 'u32[]', space=smem, size = 0x4, offset = 0x4, fixed_abs, tag = 'smem constant byte address 0x4 - core index']
  #allocation1 [shape = 'u32[144,128]{1,0:T(1,128)}', space=vmem, size = 0x12000, scoped, tag = 'internal scratch']
  %s0 = inlined_call_operand.hbm [shape: f32[1,512], index: 0, kind: input, shape index: {}]
  %s1 = inlined_call_operand.hbm [shape: f32[1,512], index: 1, kind: input, shape index: {}]
  %s2 = inlined_call_operand.vmem [shape: f32[1,512], index: 2, kind: input, shape index: {}]
  %s3 = inlined_call_operand.hbm [shape: f32[1,512], index: 3, kind: output, shape index: {0}]
  %s4 = inlined_call_operand.hbm [shape: f32[1,512], index: 4, kind: output, shape index: {1}]
  %5 = xla_tuple %s3, %s4
  %s6 = sld [smem:[#allocation0]]
  $region38: #{tpu_custom_call.1} parent=0
    _
  %s8 = ssub.s32 1, %s6
  %s9 = scalar_select 0, %s8, %s6
  $region1: #{tpu_custom_call.1} parent=0
    #allocation2 [shape = 'u8[2048]{0}', space=vmem, size = 0x800, scoped, tag = 'input window, operand 0, single buffered']
    #allocation3 [shape = 's32[1]{0}', space=sflag, size = 0x4, scoped, tag = 'scoped memory for tpu_custom_call.1']
    #allocation4 [shape = 's32[1]{0}', space=sflag, size = 0x4, scoped, tag = 'scoped memory for tpu_custom_call.1']
    #allocation5 [shape = 'u8[2048]{0}', space=vmem, size = 0x800, scoped, tag = 'input window, operand 1, single buffered']
    #allocation6 [shape = 's32[1]{0}', space=sflag, size = 0x4, scoped, tag = 'scoped memory for tpu_custom_call.1']
    #allocation7 [shape = 'u8[2048]{0}', space=vmem, size = 0x800, scoped, tag = 'output window, operand 0, single buffered']
    #allocation8 [shape = 'u8[2048]{0}', space=vmem, size = 0x800, scoped, tag = 'output window, operand 1, single buffered']
    #allocation9 [shape = 's32[1]{0}', space=sflag, size = 0x4, scoped, tag = 'scoped memory for tpu_custom_call.1']
    %10 = vsyncpa [#allocation3], 0
    %11 = vsyncpa [#allocation6], 0
    %12 = vsyncpa [#allocation4], 0
    %13 = vsyncpa [#allocation9], 0
    // Predicated region
    $region2: #{tpu_custom_call.1} parent=1 // pred_check
      _
    $region3: #{tpu_custom_call.1} parent=1 // pred_check_branch
      %15 = sbr.rel (0) target = $region5
    $region4: #{tpu_custom_call.1} parent=1 // pred_region
      %s17 = ssub.s32 64, 64
      %18 = vsyncadd [#allocation3], %s17
      %s20 = sshll.u32 [#allocation2], 4
      %s21 = int_to_ptr.vmem [resolvable:$true] %s20
      %23 = dma.hbm_to_vmem [thread:$0]  %s0, 64, %s21, [#allocation3]
    $region5: #{tpu_custom_call.1} parent=1 // pred_fallthru
      _
    // Predicated region
    $region6: #{tpu_custom_call.1} parent=1 // pred_check
      _
    $region7: #{tpu_custom_call.1} parent=1 // pred_check_branch
      %25 = sbr.rel (0) target = $region9
    $region8: #{tpu_custom_call.1} parent=1 // pred_region
      %s27 = ssub.s32 64, 64
      %28 = vsyncadd [#allocation6], %s27
      %s30 = sshll.u32 [#allocation5], 4
      %s31 = int_to_ptr.vmem [resolvable:$true] %s30
      %33 = dma.hbm_to_vmem [thread:$0]  %s1, 64, %s31, [#allocation6]
    $region9: #{tpu_custom_call.1} parent=1 // pred_fallthru
      _
    // Predicated region
    $region10: #{tpu_custom_call.1} parent=1 // pred_check
      _
    $region11: #{tpu_custom_call.1} parent=1 // pred_check_branch
      %35 = sbr.rel (0) target = $region13
    $region12: #{tpu_custom_call.1} parent=1 // pred_region
      _
    $region13: #{tpu_custom_call.1} parent=1 // pred_fallthru
      _
    // Predicated region
    $region14: #{tpu_custom_call.1} parent=1 // pred_check
      _
    $region15: #{tpu_custom_call.1} parent=1 // pred_check_branch
      %37 = sbr.rel (0) target = $region17
    $region16: #{tpu_custom_call.1} parent=1 // pred_region
      %38 = dma.done [#allocation3], 64
    $region17: #{tpu_custom_call.1} parent=1 // pred_fallthru
      _
    // Predicated region
    $region18: #{tpu_custom_call.1} parent=1 // pred_check
      _
    $region19: #{tpu_custom_call.1} parent=1 // pred_check_branch
      %40 = sbr.rel (0) target = $region21
    $region20: #{tpu_custom_call.1} parent=1 // pred_region
      %41 = dma.done [#allocation6], 64
    $region21: #{tpu_custom_call.1} parent=1 // pred_fallthru
      _
    %v42 = vld [vmem:[#allocation2] sm:$0xf]
    %v43 = vld [vmem:[#allocation5] sm:$0xf]
    %v44 = vld [vmem:[%s2] sm:$0xf]
    %v45 = vsub.f32 %v42, %v43
    %v46 = vmul.f32 %v44, %v45
    %v47 = vmul.f32 %v46, %v45
    %v48 = vadd.f32 %v47, 0.0
    %v49 = vlaneseq
    %vm50 = vcmp.ge.s32.totalorder %v49, 0
    %vm51 = vcmp.lt.s32.totalorder %v49, 512
    %vm52 = vmand %vm50, %vm51
    %53 = vst.msk [vmem:[#allocation7] sm:$0xf] %vm52, %v48
    %v54 = vadd.f32 %v44, 0.0
    %55 = vst.msk [vmem:[#allocation8] sm:$0xf] %vm52, %v54
    // Predicated region
    $region22: #{tpu_custom_call.1} parent=1 // pred_check
      _
    $region23: #{tpu_custom_call.1} parent=1 // pred_check_branch
      %57 = sbr.rel (0) target = $region25
    $region24: #{tpu_custom_call.1} parent=1 // pred_region
      %s59 = ssub.s32 64, 64
      %60 = vsyncadd [#allocation4], %s59
      %s62 = sshll.u32 [#allocation7], 4
      %s63 = int_to_ptr.vmem [resolvable:$true] %s62
      %65 = dma.vmem_to_hbm [thread:$0]  %s63, 64, %s3, [#allocation4]
    $region25: #{tpu_custom_call.1} parent=1 // pred_fallthru
      _
    // Predicated region
    $region26: #{tpu_custom_call.1} parent=1 // pred_check
      _
    $region27: #{tpu_custom_call.1} parent=1 // pred_check_branch
      %67 = sbr.rel (0) target = $region29
    $region28: #{tpu_custom_call.1} parent=1 // pred_region
      %s69 = ssub.s32 64, 64
      %70 = vsyncadd [#allocation9], %s69
      %s72 = sshll.u32 [#allocation8], 4
      %s73 = int_to_ptr.vmem [resolvable:$true] %s72
      %75 = dma.vmem_to_hbm [thread:$0]  %s73, 64, %s4, [#allocation9]
    $region29: #{tpu_custom_call.1} parent=1 // pred_fallthru
      _
    // Predicated region
    $region30: #{tpu_custom_call.1} parent=1 // pred_check
      _
    $region31: #{tpu_custom_call.1} parent=1 // pred_check_branch
      %77 = sbr.rel (0) target = $region33
    $region32: #{tpu_custom_call.1} parent=1 // pred_region
      %78 = dma.done [#allocation4], 64
    $region33: #{tpu_custom_call.1} parent=1 // pred_fallthru
      _
    // Predicated region
    $region34: #{tpu_custom_call.1} parent=1 // pred_check
      _
    $region35: #{tpu_custom_call.1} parent=1 // pred_check_branch
      %80 = sbr.rel (0) target = $region37
    $region36: #{tpu_custom_call.1} parent=1 // pred_region
      %81 = dma.done [#allocation9], 64
    $region37: #{tpu_custom_call.1} parent=1 // pred_fallthru
      _
    %82 = vsyncpa [#allocation3], 1
    %83 = vsyncpa [#allocation6], 1
    %84 = vsyncpa [#allocation4], 1
    %85 = vsyncpa [#allocation9], 1

</llo_original>
